<compile_context>
chip_gen: v7x
topology: tpu7x:2x2x1
jax: 0.10.0
libtpu: 0.0.40
codegen_flags: <defaults>
</compile_context>

<pallas_src>
import jax
import jax.numpy as jnp
from jax.experimental import pallas as pl
from jax.experimental.pallas import tpu as pltpu


def _round_up(x, m):
    return ((x + m - 1) // m) * m


def qnet_kernel(s_ref, a_ref, w1s_ref, w1a_ref, b1_ref, w2_ref, b2_ref,
                w3_ref, b3_ref, o_ref):
    """Feature-major QNetwork forward: batch on the 128-lane axis everywhere.

    s_ref   : (state_dim,  tile_b)   input tile (compute dtype after cast)
    a_ref   : (action_dim, tile_b)
    w1s_ref : (hidden, state_dim)    W1^T, state rows
    w1a_ref : (hidden, action_dim)   W1^T, action rows
    b1_ref  : (hidden, 1) f32
    w2_ref  : (hidden, hidden)       W2^T
    b2_ref  : (hidden, 1) f32
    w3_ref  : (hidden, 1) f32        W3 column
    b3_ref  : (1, 1) f32 in SMEM
    o_ref   : (1, tile_b) f32        lane-dense Q row
    """
    cdt = w1s_ref.dtype  # compute dtype (f32 or bf16), chosen by the wrapper
    s = s_ref[...].astype(cdt)
    a = a_ref[...].astype(cdt)

    # Layer 1: fused concat -> split-K matmul in transposed form:
    #   h1^T = W1s^T s^T + W1a^T a^T + b1   -> (hidden, tile_b)
    h1 = (jnp.dot(w1s_ref[...], s, preferred_element_type=jnp.float32)
          + jnp.dot(w1a_ref[...], a, preferred_element_type=jnp.float32)
          + b1_ref[...])
    h1 = jnp.maximum(h1, 0.0)

    # Layer 2: h2^T = W2^T h1^T + b2, ReLU (f32 accumulation / elementwise).
    h2 = jnp.dot(w2_ref[...], h1.astype(cdt),
                 preferred_element_type=jnp.float32) + b2_ref[...]
    h2 = jnp.maximum(h2, 0.0)

    # Layer 3 (out_features == 1): VPU multiply + cross-sublane reduction.
    # Result is naturally lane-dense: (1, tile_b).
    q = jnp.sum(h2 * w3_ref[...], axis=0, keepdims=True) + b3_ref[0, 0]
    o_ref[...] = q.astype(o_ref.dtype)


def _choose_tile(B, tile_cap):
    """Lane-multiple batch tile; >= 2 grid steps when possible (v7x 2 TCs)."""
    cap = max(128, _round_up(tile_cap, 128))
    B128 = _round_up(B, 128)
    if B128 >= 256:
        tile = min(cap, max(128, _round_up(B128 // 2, 128)))
    else:
        tile = 128
    return tile


def qnetwork_forward(state, action, params, *, tile_b=8192,
                     compute_dtype=jnp.float32):
    """Pallas-backed QNetwork forward.

    state:  (B, state_dim)   float32
    action: (B, action_dim)  float32
    returns (B, 1) float32
    """
    w1, b1, w2, b2, w3, b3 = params
    state_dim = state.shape[-1]
    action_dim = action.shape[-1]
    hidden = w1.shape[1]
    B = state.shape[0]

    # Feature-major weights: hidden on sublanes, contracted dim minor.
    # (bf16 only worthwhile if the producer stores weights/inputs in bf16;
    #  biases / w3 / epilogue stay f32 — v5e has no bf16 VPU.)
    w1s_t = jnp.asarray(w1[:state_dim, :].T, compute_dtype)    # (hidden, state_dim)
    w1a_t = jnp.asarray(w1[state_dim:, :].T, compute_dtype)    # (hidden, action_dim)
    w2_t = jnp.asarray(w2.T, compute_dtype)                    # (hidden, hidden)
    b1_c = b1.reshape(hidden, 1).astype(jnp.float32)
    b2_c = b2.reshape(hidden, 1).astype(jnp.float32)
    w3_c = w3.reshape(hidden, 1).astype(jnp.float32)
    b3_s = b3.reshape(1, 1).astype(jnp.float32)                # scalar via SMEM

    tile = _choose_tile(B, tile_b)
    Bp = _round_up(B, tile)
    num_tiles = Bp // tile
    pad = Bp - B

    # One transposed+padded copy of the inputs (fused XLA copy); this replaces
    # the torch.cat copy of the original module and makes every DMA lane-dense.
    s_t = jnp.pad(jnp.transpose(state), ((0, 0), (0, pad)))    # (state_dim, Bp)
    a_t = jnp.pad(jnp.transpose(action), ((0, 0), (0, pad)))   # (action_dim, Bp)

    lane_spec = lambda i: (0, i)    # tiled along batch (lane) axis
    const_spec = lambda i: (0, 0)   # resident weights / biases

    out = pl.pallas_call(
        qnet_kernel,
        out_shape=jax.ShapeDtypeStruct((1, Bp), jnp.float32),
        grid_spec=pltpu.PrefetchScalarGridSpec(
            num_scalar_prefetch=0,
            grid=(num_tiles,),
            in_specs=[
                pl.BlockSpec((state_dim, tile), lane_spec),     # state tile
                pl.BlockSpec((action_dim, tile), lane_spec),    # action tile
                pl.BlockSpec((hidden, state_dim), const_spec),  # W1^T (state)
                pl.BlockSpec((hidden, action_dim), const_spec), # W1^T (action)
                pl.BlockSpec((hidden, 1), const_spec),          # b1 column
                pl.BlockSpec((hidden, hidden), const_spec),     # W2^T
                pl.BlockSpec((hidden, 1), const_spec),          # b2 column
                pl.BlockSpec((hidden, 1), const_spec),          # W3 column
                pl.BlockSpec(memory_space=pltpu.MemorySpace.SMEM),  # b3 scalar
            ],
            out_specs=pl.BlockSpec((1, tile), lane_spec),       # lane-dense Q row
        ),
        compiler_params=pltpu.CompilerParams(
            dimension_semantics=("parallel",),
            vmem_limit_bytes=32 * 1024 * 1024,
        ),
    )(s_t, a_t, w1s_t, w1a_t, b1_c, w2_t, b2_c, w3_c, b3_s)

    return out[0, :B].reshape(B, 1)


def init_params(key, state_dim, action_dim, hidden_dim):
    """Deterministic init mirroring the PyTorch module's layer shapes.

    PyTorch nn.Linear stores W as (out, in); here W is (in, out) so the math
    is x @ W + b (the wrapper transposes into feature-major for the kernel).
    """
    in_dim = state_dim + action_dim
    k1, k2, k3 = jax.random.split(key, 3)
    scale = 0.1
    w1 = scale * jax.random.normal(k1, (in_dim, hidden_dim), jnp.float32)
    b1 = jnp.zeros((1, hidden_dim), jnp.float32)
    w2 = scale * jax.random.normal(k2, (hidden_dim, hidden_dim), jnp.float32)
    b2 = jnp.zeros((1, hidden_dim), jnp.float32)
    w3 = scale * jax.random.normal(k3, (hidden_dim, 1), jnp.float32)
    b3 = jnp.zeros((1, 1), jnp.float32)
    return (w1, b1, w2, b2, w3, b3)


def qnetwork_ref(state, action, params):
    """Plain-JAX reference for correctness check."""
    w1, b1, w2, b2, w3, b3 = params
    x = jnp.concatenate([state, action], axis=-1)
    h1 = jnp.maximum(x @ w1 + b1, 0.0)
    h2 = jnp.maximum(h1 @ w2 + b2, 0.0)
    return h2 @ w3 + b3


if __name__ == "__main__":
    state_dim, action_dim, hidden_dim = 8, 4, 32

    key = jax.random.PRNGKey(0)
    k_s, k_a, k_p = jax.random.split(key, 3)
    params = init_params(k_p, state_dim, action_dim, hidden_dim)

    # 1) Small batch, f32 path: exact-ish match against reference.
    B = 8
    state = jax.random.normal(k_s, (B, state_dim), jnp.float32)
    action = jax.random.normal(k_a, (B, action_dim), jnp.float32)
    out = jax.block_until_ready(qnetwork_forward(state, action, params))
    ref = qnetwork_ref(state, action, params)
    assert out.shape == (B, 1), out.shape
    assert jnp.allclose(out, ref, atol=1e-5, rtol=1e-5)

    # 2) Batch not a multiple of the lane tile: exercises pad + slice.
    B2 = 13
    state2 = jax.random.normal(k_s, (B2, state_dim), jnp.float32)
    action2 = jax.random.normal(k_a, (B2, action_dim), jnp.float32)
    out2 = jax.block_until_ready(qnetwork_forward(state2, action2, params))
    ref2 = qnetwork_ref(state2, action2, params)
    assert out2.shape == (B2, 1), out2.shape
    assert jnp.allclose(out2, ref2, atol=1e-5, rtol=1e-5)

    # 3) Multi-tile grid (>= 2 batch tiles, parallel axis) in f32.
    B3 = 2048
    state3 = jax.random.normal(k_s, (B3, state_dim), jnp.float32)
    action3 = jax.random.normal(k_a, (B3, action_dim), jnp.float32)
    out3 = jax.block_until_ready(
        qnetwork_forward(state3, action3, params, tile_b=512))
    ref3 = qnetwork_ref(state3, action3, params)
    assert out3.shape == (B3, 1), out3.shape
    assert jnp.allclose(out3, ref3, atol=1e-5, rtol=1e-5)

    # Default tile selection also gives >= 2 grid steps for B3.
    out3b = jax.block_until_ready(qnetwork_forward(state3, action3, params))
    assert jnp.allclose(out3b, ref3, atol=1e-5, rtol=1e-5)

    # 4) Optional bf16 compute path (bf16 weights/activations, f32 accum/bias).
    out4 = jax.block_until_ready(
        qnetwork_forward(state, action, params, compute_dtype=jnp.bfloat16))
    assert out4.shape == (B, 1), out4.shape
    assert jnp.allclose(out4, ref, atol=5e-2, rtol=5e-2)

    print("KERNEL_OK")
</pallas_src>

<mosaic_0001>
module attributes {stable_mosaic.version = 11 : i64} {
  func.func @qnet_kernel(%arg0: i32, %arg1: memref<8x128xf32, #tpu.memory_space<vmem>>, %arg2: memref<4x128xf32, #tpu.memory_space<vmem>>, %arg3: memref<32x8xf32, #tpu.memory_space<vmem>>, %arg4: memref<32x4xf32, #tpu.memory_space<vmem>>, %arg5: memref<32x1xf32, #tpu.memory_space<vmem>>, %arg6: memref<32x32xf32, #tpu.memory_space<vmem>>, %arg7: memref<32x1xf32, #tpu.memory_space<vmem>>, %arg8: memref<32x1xf32, #tpu.memory_space<vmem>>, %arg9: memref<1x1xf32, #tpu.memory_space<smem>>, %arg10: memref<1x128xf32, #tpu.memory_space<vmem>>) attributes {dimension_semantics = [#tpu.dimension_semantics<parallel>], iteration_bounds = array<i64: 1>, scalar_prefetch = 0 : i64, scratch_operands = 0 : i64, tpu.core_type = #tpu.core_type<tc>, window_params = [{transform_indices = @transform_0, window_bounds = array<i64: 8, 128>}, {transform_indices = @transform_1, window_bounds = array<i64: 4, 128>}, {pipeline_mode = #tpu.pipeline_mode<synchronous>, transform_indices = @transform_2, window_bounds = array<i64: 32, 8>}, {pipeline_mode = #tpu.pipeline_mode<synchronous>, transform_indices = @transform_3, window_bounds = array<i64: 32, 4>}, {pipeline_mode = #tpu.pipeline_mode<synchronous>, transform_indices = @transform_4, window_bounds = array<i64: 32, 1>}, {pipeline_mode = #tpu.pipeline_mode<synchronous>, transform_indices = @transform_5, window_bounds = array<i64: 32, 32>}, {pipeline_mode = #tpu.pipeline_mode<synchronous>, transform_indices = @transform_6, window_bounds = array<i64: 32, 1>}, {pipeline_mode = #tpu.pipeline_mode<synchronous>, transform_indices = @transform_7, window_bounds = array<i64: 32, 1>}, {transform_indices = @transform_8, window_bounds = array<i64: 1, 1>}, {transform_indices = @transform_9, window_bounds = array<i64: 1, 128>}]} {
    %c0 = arith.constant 0 : index
    %c0_0 = arith.constant 0 : index
    %0 = vector.load %arg1[%c0, %c0_0] : memref<8x128xf32, #tpu.memory_space<vmem>>, vector<8x128xf32>
    %c0_1 = arith.constant 0 : index
    %c0_2 = arith.constant 0 : index
    %1 = vector.load %arg2[%c0_1, %c0_2] : memref<4x128xf32, #tpu.memory_space<vmem>>, vector<4x128xf32>
    %c0_3 = arith.constant 0 : index
    %c0_4 = arith.constant 0 : index
    %2 = vector.load %arg3[%c0_3, %c0_4] : memref<32x8xf32, #tpu.memory_space<vmem>>, vector<32x8xf32>
    %cst = arith.constant dense<0.000000e+00> : vector<32x128xf32>
    %3 = tpu.matmul %2, %0, %cst {dimension_numbers = #tpu.dot_dimension_numbers<[1], [0], [0], [1], [0, 0, 1, 1], [], []>} : vector<32x8xf32>, vector<8x128xf32>, vector<32x128xf32> -> vector<32x128xf32>
    %c0_5 = arith.constant 0 : index
    %c0_6 = arith.constant 0 : index
    %4 = vector.load %arg4[%c0_5, %c0_6] : memref<32x4xf32, #tpu.memory_space<vmem>>, vector<32x4xf32>
    %cst_7 = arith.constant dense<0.000000e+00> : vector<32x128xf32>
    %5 = tpu.matmul %4, %1, %cst_7 {dimension_numbers = #tpu.dot_dimension_numbers<[1], [0], [0], [1], [0, 0, 1, 1], [], []>} : vector<32x4xf32>, vector<4x128xf32>, vector<32x128xf32> -> vector<32x128xf32>
    %6 = arith.addf %3, %5 : vector<32x128xf32>
    %c0_8 = arith.constant 0 : index
    %c0_9 = arith.constant 0 : index
    %7 = vector.load %arg5[%c0_8, %c0_9] : memref<32x1xf32, #tpu.memory_space<vmem>>, vector<32x1xf32>
    %8 = vector.broadcast %7 : vector<32x1xf32> to vector<32x128xf32>
    %9 = arith.addf %6, %8 : vector<32x128xf32>
    %cst_10 = arith.constant 0.000000e+00 : f32
    %10 = vector.broadcast %cst_10 : f32 to vector<32x128xf32>
    %11 = arith.maximumf %9, %10 : vector<32x128xf32>
    %c0_11 = arith.constant 0 : index
    %c0_12 = arith.constant 0 : index
    %12 = vector.load %arg6[%c0_11, %c0_12] : memref<32x32xf32, #tpu.memory_space<vmem>>, vector<32x32xf32>
    %cst_13 = arith.constant dense<0.000000e+00> : vector<32x128xf32>
    %13 = tpu.matmul %12, %11, %cst_13 {dimension_numbers = #tpu.dot_dimension_numbers<[1], [0], [0], [1], [0, 0, 1, 1], [], []>} : vector<32x32xf32>, vector<32x128xf32>, vector<32x128xf32> -> vector<32x128xf32>
    %c0_14 = arith.constant 0 : index
    %c0_15 = arith.constant 0 : index
    %14 = vector.load %arg7[%c0_14, %c0_15] : memref<32x1xf32, #tpu.memory_space<vmem>>, vector<32x1xf32>
    %15 = vector.broadcast %14 : vector<32x1xf32> to vector<32x128xf32>
    %16 = arith.addf %13, %15 : vector<32x128xf32>
    %cst_16 = arith.constant 0.000000e+00 : f32
    %17 = vector.broadcast %cst_16 : f32 to vector<32x128xf32>
    %18 = arith.maximumf %16, %17 : vector<32x128xf32>
    %c0_17 = arith.constant 0 : index
    %c0_18 = arith.constant 0 : index
    %19 = vector.load %arg8[%c0_17, %c0_18] : memref<32x1xf32, #tpu.memory_space<vmem>>, vector<32x1xf32>
    %20 = vector.broadcast %19 : vector<32x1xf32> to vector<32x128xf32>
    %21 = arith.mulf %18, %20 : vector<32x128xf32>
    %cst_19 = arith.constant dense<0.000000e+00> : vector<128xf32>
    %22 = vector.multi_reduction <add>, %21, %cst_19 [0] : vector<32x128xf32> to vector<128xf32>
    %23 = vector.shape_cast %22 : vector<128xf32> to vector<1x128xf32>
    %c0_20 = arith.constant 0 : index
    %c0_21 = arith.constant 0 : index
    %24 = memref.load %arg9[%c0_20, %c0_21] : memref<1x1xf32, #tpu.memory_space<smem>>
    %25 = vector.broadcast %24 : f32 to vector<1x128xf32>
    %26 = arith.addf %23, %25 : vector<1x128xf32>
    %c0_22 = arith.constant 0 : index
    %c0_23 = arith.constant 0 : index
    %27 = vector.load %arg10[%c0_22, %c0_23] : memref<1x128xf32, #tpu.memory_space<vmem>>, vector<1x128xf32>
    tpu.vector_store %arg10[%c0_22, %c0_23], %26 {strides = array<i32>} : memref<1x128xf32, #tpu.memory_space<vmem>>, vector<1x128xf32>,
    return
  }
  func.func @transform_0(%arg0: i32) -> (i32, i32) {
    %c0_i32 = arith.constant 0 : i32
    %c0_i32_0 = arith.constant 0 : i32
    return %c0_i32, %arg0 : i32, i32
  }
  func.func @transform_1(%arg0: i32) -> (i32, i32) {
    %c0_i32 = arith.constant 0 : i32
    %c0_i32_0 = arith.constant 0 : i32
    return %c0_i32, %arg0 : i32, i32
  }
  func.func @transform_2(%arg0: i32) -> (i32, i32) {
    %c0_i32 = arith.constant 0 : i32
    %c0_i32_0 = arith.constant 0 : i32
    %c0_i32_1 = arith.constant 0 : i32
    return %c0_i32, %c0_i32_0 : i32, i32
  }
  func.func @transform_3(%arg0: i32) -> (i32, i32) {
    %c0_i32 = arith.constant 0 : i32
    %c0_i32_0 = arith.constant 0 : i32
    %c0_i32_1 = arith.constant 0 : i32
    return %c0_i32, %c0_i32_0 : i32, i32
  }
  func.func @transform_4(%arg0: i32) -> (i32, i32) {
    %c0_i32 = arith.constant 0 : i32
    %c0_i32_0 = arith.constant 0 : i32
    %c0_i32_1 = arith.constant 0 : i32
    return %c0_i32, %c0_i32_0 : i32, i32
  }
  func.func @transform_5(%arg0: i32) -> (i32, i32) {
    %c0_i32 = arith.constant 0 : i32
    %c0_i32_0 = arith.constant 0 : i32
    %c0_i32_1 = arith.constant 0 : i32
    return %c0_i32, %c0_i32_0 : i32, i32
  }
  func.func @transform_6(%arg0: i32) -> (i32, i32) {
    %c0_i32 = arith.constant 0 : i32
    %c0_i32_0 = arith.constant 0 : i32
    %c0_i32_1 = arith.constant 0 : i32
    return %c0_i32, %c0_i32_0 : i32, i32
  }
  func.func @transform_7(%arg0: i32) -> (i32, i32) {
    %c0_i32 = arith.constant 0 : i32
    %c0_i32_0 = arith.constant 0 : i32
    %c0_i32_1 = arith.constant 0 : i32
    return %c0_i32, %c0_i32_0 : i32, i32
  }
  func.func @transform_8(%arg0: i32) -> (i32, i32) {
    %c0_i32 = arith.constant 0 : i32
    %c0_i32_0 = arith.constant 0 : i32
    %c0_i32_1 = arith.constant 0 : i32
    return %c0_i32, %c0_i32_0 : i32, i32
  }
  func.func @transform_9(%arg0: i32) -> (i32, i32) {
    %c0_i32 = arith.constant 0 : i32
    %c0_i32_0 = arith.constant 0 : i32
    return %c0_i32, %arg0 : i32, i32
  }
}

</mosaic_0001>

<llo_original>
// kernel: tpu_custom_call.1
$region0: #{tpu_custom_call.1}
  #allocation0 [shape = 'u32[]', space=smem, size = 0x4, offset = 0x4, fixed_abs, tag = 'smem constant byte address 0x4 - core index']
  #allocation1 [shape = 'u32[144,128]{1,0:T(1,128)}', space=vmem, size = 0x12000, scoped, tag = 'internal scratch']
  #allocation2 [shape = 'f32[1,1]{1,0:T(1,128)S(6)}', space=smem, size = 0x200, scoped, tag = 'scoped memory for tpu_custom_call.1']
  %s0 = inlined_call_operand.vmem [shape: f32[8,128], index: 0, kind: input, shape index: {}]
  %s1 = inlined_call_operand.vmem [shape: f32[4,128], index: 1, kind: input, shape index: {}]
  %s2 = inlined_call_operand.vmem [shape: f32[32,8], index: 2, kind: input, shape index: {}]
  %s3 = inlined_call_operand.vmem [shape: f32[32,4], index: 3, kind: input, shape index: {}]
  %s4 = inlined_call_operand.vmem [shape: f32[32,1], index: 4, kind: input, shape index: {}]
  %s5 = inlined_call_operand.vmem [shape: f32[32,32], index: 5, kind: input, shape index: {}]
  %s6 = inlined_call_operand.vmem [shape: f32[32,1], index: 6, kind: input, shape index: {}]
  %s7 = inlined_call_operand.vmem [shape: f32[32,1], index: 7, kind: input, shape index: {}]
  %s8 = inlined_call_operand.<no memory space> [shape: f32[1,1], index: 8, kind: input, shape index: {}]
  %s9 = inlined_call_operand.hbm [shape: f32[1,128], index: 9, kind: output, shape index: {}]
  %s10 = sld [smem:[#allocation0]]
  $region46: #{tpu_custom_call.1} parent=0
    _
  %s12 = ssub.s32 1, %s10
  %s13 = scalar_select 0, %s12, %s10
  %14 = sst [smem:[#allocation2]] %s8
  $region1: #{tpu_custom_call.1} parent=0
    #allocation3 [shape = 'u8[512]{0}', space=vmem, size = 0x400, scoped, tag = 'output window, operand 0, single buffered']
    #allocation4 [shape = 's32[1]{0}', space=sflag, size = 0x4, scoped, tag = 'scoped memory for tpu_custom_call.1']
    %15 = vsyncpa [#allocation4], 0
    // Predicated region
    $region2: #{tpu_custom_call.1} parent=1 // pred_check
      _
    $region3: #{tpu_custom_call.1} parent=1 // pred_check_branch
      %17 = sbr.rel (0) target = $region5
    $region4: #{tpu_custom_call.1} parent=1 // pred_region
      _
    $region5: #{tpu_custom_call.1} parent=1 // pred_fallthru
      _
    // Predicated region
    $region6: #{tpu_custom_call.1} parent=1 // pred_check
      _
    $region7: #{tpu_custom_call.1} parent=1 // pred_check_branch
      %19 = sbr.rel (0) target = $region9
    $region8: #{tpu_custom_call.1} parent=1 // pred_region
      _
    $region9: #{tpu_custom_call.1} parent=1 // pred_fallthru
      _
    // Predicated region
    $region10: #{tpu_custom_call.1} parent=1 // pred_check
      _
    $region11: #{tpu_custom_call.1} parent=1 // pred_check_branch
      %21 = sbr.rel (0) target = $region13
    $region12: #{tpu_custom_call.1} parent=1 // pred_region
      _
    $region13: #{tpu_custom_call.1} parent=1 // pred_fallthru
      _
    // Predicated region
    $region14: #{tpu_custom_call.1} parent=1 // pred_check
      _
    $region15: #{tpu_custom_call.1} parent=1 // pred_check_branch
      %23 = sbr.rel (0) target = $region17
    $region16: #{tpu_custom_call.1} parent=1 // pred_region
      _
    $region17: #{tpu_custom_call.1} parent=1 // pred_fallthru
      _
    // Predicated region
    $region18: #{tpu_custom_call.1} parent=1 // pred_check
      _
    $region19: #{tpu_custom_call.1} parent=1 // pred_check_branch
      %25 = sbr.rel (0) target = $region21
    $region20: #{tpu_custom_call.1} parent=1 // pred_region
      _
    $region21: #{tpu_custom_call.1} parent=1 // pred_fallthru
      _
    // Predicated region
    $region22: #{tpu_custom_call.1} parent=1 // pred_check
      _
    $region23: #{tpu_custom_call.1} parent=1 // pred_check_branch
      %27 = sbr.rel (0) target = $region25
    $region24: #{tpu_custom_call.1} parent=1 // pred_region
      _
    $region25: #{tpu_custom_call.1} parent=1 // pred_fallthru
      _
    // Predicated region
    $region26: #{tpu_custom_call.1} parent=1 // pred_check
      _
    $region27: #{tpu_custom_call.1} parent=1 // pred_check_branch
      %29 = sbr.rel (0) target = $region29
    $region28: #{tpu_custom_call.1} parent=1 // pred_region
      _
    $region29: #{tpu_custom_call.1} parent=1 // pred_fallthru
      _
    // Predicated region
    $region30: #{tpu_custom_call.1} parent=1 // pred_check
      _
    $region31: #{tpu_custom_call.1} parent=1 // pred_check_branch
      %31 = sbr.rel (0) target = $region33
    $region32: #{tpu_custom_call.1} parent=1 // pred_region
      _
    $region33: #{tpu_custom_call.1} parent=1 // pred_fallthru
      _
    // Predicated region
    $region34: #{tpu_custom_call.1} parent=1 // pred_check
      _
    $region35: #{tpu_custom_call.1} parent=1 // pred_check_branch
      %33 = sbr.rel (0) target = $region37
    $region36: #{tpu_custom_call.1} parent=1 // pred_region
      _
    $region37: #{tpu_custom_call.1} parent=1 // pred_fallthru
      _
    %v34 = vld [vmem:[%s0] sm:$0xff]
    %v35 = vld [vmem:[%s1] sm:$0xf]
    %v36 = vld [vmem:[%s2] sm:$0xff]
    %v37 = vld [vmem:[%s2 + $0x8] sm:$0xff]
    %v38 = vld [vmem:[%s2 + $0x10] sm:$0xff]
    %v39 = vld [vmem:[%s2 + $0x18] sm:$0xff]
    %v40 = vld [vmem:[%s3] sm:$0xff]
    %v41 = vld [vmem:[%s3 + $0x8] sm:$0xff]
    %v42 = vld [vmem:[%s3 + $0x10] sm:$0xff]
    %v43 = vld [vmem:[%s3 + $0x18] sm:$0xff]
    %vm44 = vcmask 31744
    %v46 = vsel %vm44, %v40, 0
    %v49 = vsel %vm44, %v41, 0
    %v52 = vsel %vm44, %v42, 0
    %v55 = vsel %vm44, %v43, 0
    %vm57 = vcmask 1043456
    %v59 = vsel %vm57, %v35, 0
    %61 = vmatprep.subr.mxu0 0.0
    %62 = vmatpush1.msra.mxu0 %v59
    %63 = vmatprep.subr.mxu0 0.0
    %64 = vmatpush1.msra.mxu0 0.0
    %65 = vmatprep.subr.mxu0 0.0
    %66 = vmatpush1.msra.mxu0 0.0
    %67 = vmatprep.subr.mxu0 0.0
    %68 = vmatpush1.msra.mxu0 0.0
    %69 = vmatprep.subr.mxu0 0.0
    %70 = vmatpush1.msra.mxu0 0.0
    %71 = vmatprep.subr.mxu0 0.0
    %72 = vmatpush1.msra.mxu0 0.0
    %73 = vmatprep.subr.mxu0 0.0
    %74 = vmatpush1.msra.mxu0 0.0
    %75 = vmatprep.subr.mxu0 0.0
    %76 = vmatpush1.msra.mxu0 0.0
    %77 = vmatprep.subr.mxu0 0.0
    %78 = vmatpush1.msra.mxu0 0.0
    %79 = vmatprep.subr.mxu0 0.0
    %80 = vmatpush1.msra.mxu0 0.0
    %81 = vmatprep.subr.mxu0 0.0
    %82 = vmatpush1.msra.mxu0 0.0
    %83 = vmatprep.subr.mxu0 0.0
    %84 = vmatpush1.msra.mxu0 0.0
    %85 = vmatprep.subr.mxu0 0.0
    %86 = vmatpush1.msra.mxu0 0.0
    %87 = vmatprep.subr.mxu0 0.0
    %88 = vmatpush1.msra.mxu0 0.0
    %89 = vmatprep.subr.mxu0 0.0
    %90 = vmatpush1.msra.mxu0 0.0
    %91 = vmatprep.subr.mxu0 0.0
    %92 = vmatpush1.msra.mxu0 0.0
    %93 = vmatprep.subr.mxu0 0.0
    %94 = vmatpush1.msra.mxu0 0.0
    %95 = vmatprep.subr.mxu0 0.0
    %96 = vmatpush1.msra.mxu0 0.0
    %97 = vmatprep.subr.mxu0 0.0
    %98 = vmatpush1.msra.mxu0 0.0
    %99 = vmatprep.subr.mxu0 0.0
    %100 = vmatpush1.msra.mxu0 0.0
    %101 = vmatprep.subr.mxu0 0.0
    %102 = vmatpush1.msra.mxu0 0.0
    %103 = vmatprep.subr.mxu0 0.0
    %104 = vmatpush1.msra.mxu0 0.0
    %105 = vmatprep.subr.mxu0 0.0
    %106 = vmatpush1.msra.mxu0 0.0
    %107 = vmatprep.subr.mxu0 0.0
    %108 = vmatpush1.msra.mxu0 0.0
    %109 = vmatprep.subr.mxu0 0.0
    %110 = vmatpush1.msra.mxu0 0.0
    %111 = vmatprep.subr.mxu0 0.0
    %112 = vmatpush1.msra.mxu0 0.0
    %113 = vmatprep.subr.mxu0 0.0
    %114 = vmatpush1.msra.mxu0 0.0
    %115 = vmatprep.subr.mxu0 0.0
    %116 = vmatpush1.msra.mxu0 0.0
    %117 = vmatprep.subr.mxu0 0.0
    %118 = vmatpush1.msra.mxu0 0.0
    %119 = vmatprep.subr.mxu0 0.0
    %120 = vmatpush1.msra.mxu0 0.0
    %121 = vmatprep.subr.mxu0 0.0
    %122 = vmatpush1.msra.mxu0 0.0
    %123 = vmatprep.subr.mxu0 0.0
    %124 = vmatpush1.msra.mxu0 0.0
    %125 = vmatprep.mubr.f32.mxu0 0.0
    %126 = vmatmul.mubr.f32.gmra.mrb[0].mxu0 %v46
    %v127 = vpop.f32.mrb[0].mxu0
    %v128 = vadd.f32 0.0, %v127
    %v129 = vpop.f32.mrb[0].mxu0
    %130 = vmatprep.mubr.f32.mxu0 0.0
    %131 = vmatmul.mubr.f32.gmra.mrb[0].mxu0 %v49
    %v132 = vpop.f32.mrb[0].mxu0
    %v133 = vadd.f32 0.0, %v132
    %v134 = vpop.f32.mrb[0].mxu0
    %135 = vmatprep.mubr.f32.mxu0 0.0
    %136 = vmatmul.mubr.f32.gmra.mrb[0].mxu0 %v52
    %v137 = vpop.f32.mrb[0].mxu0
    %v138 = vadd.f32 0.0, %v137
    %v139 = vpop.f32.mrb[0].mxu0
    %140 = vmatprep.mubr.f32.mxu0 0.0
    %141 = vmatmul.mubr.f32.gmra.mrb[0].mxu0 %v55
    %v142 = vpop.f32.mrb[0].mxu0
    %v143 = vadd.f32 0.0, %v142
    %v144 = vpop.f32.mrb[0].mxu0
    %145 = vdwg.mxu0
    %vm146 = vcmask 64512
    %v148 = vsel %vm146, %v36, 0
    %v151 = vsel %vm146, %v37, 0
    %v154 = vsel %vm146, %v38, 0
    %v157 = vsel %vm146, %v39, 0
    %159 = vmatprep.subr.mxu0 0.0
    %160 = vmatpush1.msra.mxu0 %v34
    %161 = vmatprep.subr.mxu0 0.0
    %162 = vmatpush1.msra.mxu0 0.0
    %163 = vmatprep.subr.mxu0 0.0
    %164 = vmatpush1.msra.mxu0 0.0
    %165 = vmatprep.subr.mxu0 0.0
    %166 = vmatpush1.msra.mxu0 0.0
    %167 = vmatprep.subr.mxu0 0.0
    %168 = vmatpush1.msra.mxu0 0.0
    %169 = vmatprep.subr.mxu0 0.0
    %170 = vmatpush1.msra.mxu0 0.0
    %171 = vmatprep.subr.mxu0 0.0
    %172 = vmatpush1.msra.mxu0 0.0
    %173 = vmatprep.subr.mxu0 0.0
    %174 = vmatpush1.msra.mxu0 0.0
    %175 = vmatprep.subr.mxu0 0.0
    %176 = vmatpush1.msra.mxu0 0.0
    %177 = vmatprep.subr.mxu0 0.0
    %178 = vmatpush1.msra.mxu0 0.0
    %179 = vmatprep.subr.mxu0 0.0
    %180 = vmatpush1.msra.mxu0 0.0
    %181 = vmatprep.subr.mxu0 0.0
    %182 = vmatpush1.msra.mxu0 0.0
    %183 = vmatprep.subr.mxu0 0.0
    %184 = vmatpush1.msra.mxu0 0.0
    %185 = vmatprep.subr.mxu0 0.0
    %186 = vmatpush1.msra.mxu0 0.0
    %187 = vmatprep.subr.mxu0 0.0
    %188 = vmatpush1.msra.mxu0 0.0
    %189 = vmatprep.subr.mxu0 0.0
    %190 = vmatpush1.msra.mxu0 0.0
    %191 = vmatprep.subr.mxu0 0.0
    %192 = vmatpush1.msra.mxu0 0.0
    %193 = vmatprep.subr.mxu0 0.0
    %194 = vmatpush1.msra.mxu0 0.0
    %195 = vmatprep.subr.mxu0 0.0
    %196 = vmatpush1.msra.mxu0 0.0
    %197 = vmatprep.subr.mxu0 0.0
    %198 = vmatpush1.msra.mxu0 0.0
    %199 = vmatprep.subr.mxu0 0.0
    %200 = vmatpush1.msra.mxu0 0.0
    %201 = vmatprep.subr.mxu0 0.0
    %202 = vmatpush1.msra.mxu0 0.0
    %203 = vmatprep.subr.mxu0 0.0
    %204 = vmatpush1.msra.mxu0 0.0
    %205 = vmatprep.subr.mxu0 0.0
    %206 = vmatpush1.msra.mxu0 0.0
    %207 = vmatprep.subr.mxu0 0.0
    %208 = vmatpush1.msra.mxu0 0.0
    %209 = vmatprep.subr.mxu0 0.0
    %210 = vmatpush1.msra.mxu0 0.0
    %211 = vmatprep.subr.mxu0 0.0
    %212 = vmatpush1.msra.mxu0 0.0
    %213 = vmatprep.subr.mxu0 0.0
    %214 = vmatpush1.msra.mxu0 0.0
    %215 = vmatprep.subr.mxu0 0.0
    %216 = vmatpush1.msra.mxu0 0.0
    %217 = vmatprep.subr.mxu0 0.0
    %218 = vmatpush1.msra.mxu0 0.0
    %219 = vmatprep.subr.mxu0 0.0
    %220 = vmatpush1.msra.mxu0 0.0
    %221 = vmatprep.subr.mxu0 0.0
    %222 = vmatpush1.msra.mxu0 0.0
    %223 = vmatprep.mubr.f32.mxu0 0.0
    %224 = vmatmul.mubr.f32.gmra.mrb[0].mxu0 %v148
    %v225 = vpop.f32.mrb[0].mxu0
    %v226 = vadd.f32 %v128, %v225
    %v227 = vpop.f32.mrb[0].mxu0
    %228 = vmatprep.mubr.f32.mxu0 0.0
    %229 = vmatmul.mubr.f32.gmra.mrb[0].mxu0 %v151
    %v230 = vpop.f32.mrb[0].mxu0
    %v231 = vadd.f32 %v133, %v230
    %v232 = vpop.f32.mrb[0].mxu0
    %233 = vmatprep.mubr.f32.mxu0 0.0
    %234 = vmatmul.mubr.f32.gmra.mrb[0].mxu0 %v154
    %v235 = vpop.f32.mrb[0].mxu0
    %v236 = vadd.f32 %v138, %v235
    %v237 = vpop.f32.mrb[0].mxu0
    %238 = vmatprep.mubr.f32.mxu0 0.0
    %239 = vmatmul.mubr.f32.gmra.mrb[0].mxu0 %v157
    %v240 = vpop.f32.mrb[0].mxu0
    %v241 = vadd.f32 %v143, %v240
    %v242 = vpop.f32.mrb[0].mxu0
    %243 = vdwg.mxu0
    %v244 = vld [vmem:[%s4] sm:$0xff]
    %v245 = vld [vmem:[%s4 + $0x8] sm:$0xff]
    %v246 = vld [vmem:[%s4 + $0x10] sm:$0xff]
    %v247 = vld [vmem:[%s4 + $0x18] sm:$0xff]
    %249 = vset.pattern.permute.xlu0 0
    %250 = vperm.xlu0 %249, %v244
    %v251 = vpop.permute.xlu0 %250
    %254 = vset.pattern.permute.xlu0 0
    %255 = vperm.xlu0 %254, %v245
    %v256 = vpop.permute.xlu0 %255
    %259 = vset.pattern.permute.xlu0 0
    %260 = vperm.xlu0 %259, %v246
    %v261 = vpop.permute.xlu0 %260
    %264 = vset.pattern.permute.xlu0 0
    %265 = vperm.xlu0 %264, %v247
    %v266 = vpop.permute.xlu0 %265
    %v268 = vadd.f32 %v226, %v251
    %v269 = vadd.f32 %v231, %v256
    %v270 = vadd.f32 %v236, %v261
    %v271 = vadd.f32 %v241, %v266
    %v272 = vmax.f32 %v268, 0.0
    %v273 = vmax.f32 %v269, 0.0
    %v274 = vmax.f32 %v270, 0.0
    %v275 = vmax.f32 %v271, 0.0
    %v276 = vld [vmem:[%s5] sm:$0xff]
    %v277 = vld [vmem:[%s5 + $0x8] sm:$0xff]
    %v278 = vld [vmem:[%s5 + $0x10] sm:$0xff]
    %v279 = vld [vmem:[%s5 + $0x18] sm:$0xff]
    %v280 = vld [vmem:[%s6] sm:$0xff]
    %v281 = vld [vmem:[%s6 + $0x8] sm:$0xff]
    %v282 = vld [vmem:[%s6 + $0x10] sm:$0xff]
    %v283 = vld [vmem:[%s6 + $0x18] sm:$0xff]
    %285 = vset.pattern.permute.xlu0 0
    %286 = vperm.xlu0 %285, %v280
    %v287 = vpop.permute.xlu0 %286
    %290 = vset.pattern.permute.xlu0 0
    %291 = vperm.xlu0 %290, %v281
    %v292 = vpop.permute.xlu0 %291
    %295 = vset.pattern.permute.xlu0 0
    %296 = vperm.xlu0 %295, %v282
    %v297 = vpop.permute.xlu0 %296
    %300 = vset.pattern.permute.xlu0 0
    %301 = vperm.xlu0 %300, %v283
    %v302 = vpop.permute.xlu0 %301
    %vm304 = vcmask 261120
    %v306 = vsel %vm304, %v276, 0
    %v309 = vsel %vm304, %v277, 0
    %v312 = vsel %vm304, %v278, 0
    %v315 = vsel %vm304, %v279, 0
    %317 = vmatprep.subr.mxu0 0.0
    %318 = vmatpush1.msra.mxu0 %v272
    %319 = vmatprep.subr.mxu0 0.0
    %320 = vmatpush1.msra.mxu0 %v273
    %321 = vmatprep.subr.mxu0 0.0
    %322 = vmatpush1.msra.mxu0 %v274
    %323 = vmatprep.subr.mxu0 0.0
    %324 = vmatpush1.msra.mxu0 %v275
    %325 = vmatprep.subr.mxu0 0.0
    %326 = vmatpush1.msra.mxu0 0.0
    %327 = vmatprep.subr.mxu0 0.0
    %328 = vmatpush1.msra.mxu0 0.0
    %329 = vmatprep.subr.mxu0 0.0
    %330 = vmatpush1.msra.mxu0 0.0
    %331 = vmatprep.subr.mxu0 0.0
    %332 = vmatpush1.msra.mxu0 0.0
    %333 = vmatprep.subr.mxu0 0.0
    %334 = vmatpush1.msra.mxu0 0.0
    %335 = vmatprep.subr.mxu0 0.0
    %336 = vmatpush1.msra.mxu0 0.0
    %337 = vmatprep.subr.mxu0 0.0
    %338 = vmatpush1.msra.mxu0 0.0
    %339 = vmatprep.subr.mxu0 0.0
    %340 = vmatpush1.msra.mxu0 0.0
    %341 = vmatprep.subr.mxu0 0.0
    %342 = vmatpush1.msra.mxu0 0.0
    %343 = vmatprep.subr.mxu0 0.0
    %344 = vmatpush1.msra.mxu0 0.0
    %345 = vmatprep.subr.mxu0 0.0
    %346 = vmatpush1.msra.mxu0 0.0
    %347 = vmatprep.subr.mxu0 0.0
    %348 = vmatpush1.msra.mxu0 0.0
    %349 = vmatprep.subr.mxu0 0.0
    %350 = vmatpush1.msra.mxu0 0.0
    %351 = vmatprep.subr.mxu0 0.0
    %352 = vmatpush1.msra.mxu0 0.0
    %353 = vmatprep.subr.mxu0 0.0
    %354 = vmatpush1.msra.mxu0 0.0
    %355 = vmatprep.subr.mxu0 0.0
    %356 = vmatpush1.msra.mxu0 0.0
    %357 = vmatprep.subr.mxu0 0.0
    %358 = vmatpush1.msra.mxu0 0.0
    %359 = vmatprep.subr.mxu0 0.0
    %360 = vmatpush1.msra.mxu0 0.0
    %361 = vmatprep.subr.mxu0 0.0
    %362 = vmatpush1.msra.mxu0 0.0
    %363 = vmatprep.subr.mxu0 0.0
    %364 = vmatpush1.msra.mxu0 0.0
    %365 = vmatprep.subr.mxu0 0.0
    %366 = vmatpush1.msra.mxu0 0.0
    %367 = vmatprep.subr.mxu0 0.0
    %368 = vmatpush1.msra.mxu0 0.0
    %369 = vmatprep.subr.mxu0 0.0
    %370 = vmatpush1.msra.mxu0 0.0
    %371 = vmatprep.subr.mxu0 0.0
    %372 = vmatpush1.msra.mxu0 0.0
    %373 = vmatprep.subr.mxu0 0.0
    %374 = vmatpush1.msra.mxu0 0.0
    %375 = vmatprep.subr.mxu0 0.0
    %376 = vmatpush1.msra.mxu0 0.0
    %377 = vmatprep.subr.mxu0 0.0
    %378 = vmatpush1.msra.mxu0 0.0
    %379 = vmatprep.subr.mxu0 0.0
    %380 = vmatpush1.msra.mxu0 0.0
    %381 = vmatprep.mubr.f32.mxu0 0.0
    %382 = vmatmul.mubr.f32.gmra.mrb[0].mxu0 %v306
    %v383 = vpop.f32.mrb[0].mxu0
    %v384 = vadd.f32 %v287, %v383
    %v385 = vpop.f32.mrb[0].mxu0
    %386 = vmatprep.mubr.f32.mxu0 0.0
    %387 = vmatmul.mubr.f32.gmra.mrb[0].mxu0 %v309
    %v388 = vpop.f32.mrb[0].mxu0
    %v389 = vadd.f32 %v292, %v388
    %v390 = vpop.f32.mrb[0].mxu0
    %391 = vmatprep.mubr.f32.mxu0 0.0
    %392 = vmatmul.mubr.f32.gmra.mrb[0].mxu0 %v312
    %v393 = vpop.f32.mrb[0].mxu0
    %v394 = vadd.f32 %v297, %v393
    %v395 = vpop.f32.mrb[0].mxu0
    %396 = vmatprep.mubr.f32.mxu0 0.0
    %397 = vmatmul.mubr.f32.gmra.mrb[0].mxu0 %v315
    %v398 = vpop.f32.mrb[0].mxu0
    %v399 = vadd.f32 %v302, %v398
    %v400 = vpop.f32.mrb[0].mxu0
    %401 = vdwg.mxu0
    %v402 = vmax.f32 %v384, 0.0
    %v403 = vmax.f32 %v389, 0.0
    %v404 = vmax.f32 %v394, 0.0
    %v405 = vmax.f32 %v399, 0.0
    %v406 = vld [vmem:[%s7] sm:$0xff]
    %v407 = vld [vmem:[%s7 + $0x8] sm:$0xff]
    %v408 = vld [vmem:[%s7 + $0x10] sm:$0xff]
    %v409 = vld [vmem:[%s7 + $0x18] sm:$0xff]
    %411 = vset.pattern.permute.xlu0 0
    %412 = vperm.xlu0 %411, %v406
    %v413 = vpop.permute.xlu0 %412
    %416 = vset.pattern.permute.xlu0 0
    %417 = vperm.xlu0 %416, %v407
    %v418 = vpop.permute.xlu0 %417
    %421 = vset.pattern.permute.xlu0 0
    %422 = vperm.xlu0 %421, %v408
    %v423 = vpop.permute.xlu0 %422
    %426 = vset.pattern.permute.xlu0 0
    %427 = vperm.xlu0 %426, %v409
    %v428 = vpop.permute.xlu0 %427
    %v430 = vmul.f32 %v402, %v413
    %v431 = vmul.f32 %v403, %v418
    %v432 = vmul.f32 %v404, %v423
    %v433 = vmul.f32 %v405, %v428
    %v434 = vadd.f32 %v430, %v431
    %v435 = vadd.f32 %v434, %v432
    %v436 = vadd.f32 %v435, %v433
    %v437 = vrot.slane %v436, 4
    %v438 = vadd.f32 %v436, %v437
    %v439 = vrot.slane %v438, 2
    %v440 = vadd.f32 %v438, %v439
    %v441 = vrot.slane %v440, 1
    %v442 = vadd.f32 %v440, %v441
    %s443 = sld [smem:[#allocation2]]
    %v444 = vstv %s443
    %v445 = vadd.f32 %v442, %v444
    %446 = vst [vmem:[#allocation3] sm:$0x1] %v445
    // Predicated region
    $region38: #{tpu_custom_call.1} parent=1 // pred_check
      _
    $region39: #{tpu_custom_call.1} parent=1 // pred_check_branch
      %448 = sbr.rel (0) target = $region41
    $region40: #{tpu_custom_call.1} parent=1 // pred_region
      %s450 = ssub.s32 16, 16
      %451 = vsyncadd [#allocation4], %s450
      %s453 = sshll.u32 [#allocation3], 4
      %s454 = int_to_ptr.vmem [resolvable:$true] %s453
      %456 = dma.vmem_to_hbm [thread:$0]  %s454, 16, %s9, [#allocation4]
    $region41: #{tpu_custom_call.1} parent=1 // pred_fallthru
      _
    // Predicated region
    $region42: #{tpu_custom_call.1} parent=1 // pred_check
      _
    $region43: #{tpu_custom_call.1} parent=1 // pred_check_branch
      %458 = sbr.rel (0) target = $region45
    $region44: #{tpu_custom_call.1} parent=1 // pred_region
      %459 = dma.done [#allocation4], 16
    $region45: #{tpu_custom_call.1} parent=1 // pred_fallthru
      _
    %460 = vsyncpa [#allocation4], 1

</llo_original>
